<compile_context>
chip_gen: v6e
topology: v6e:2x2x1
jax: 0.10.0
libtpu: 0.0.40
codegen_flags: <defaults>
</compile_context>

<pallas_src>
import functools

import jax
import jax.numpy as jnp
import numpy as np
from jax.experimental import pallas as pl
from jax.experimental.pallas import tpu as pltpu


# ----------------------- Pass 1: BN statistics kernel -----------------------
def _stats_kernel(x_ref, w1_ref, b1_ref, g_ref, s_ref, *, hw, tile_p, padded):
    # x_ref : (C_in, TP) bf16    w1_ref: (ndf, C_in) bf16    b1_ref: (ndf, 1) f32
    # g_ref : (ndf, ndf) f32  per-(batch, tile) partial Gram of h1
    # s_ref : (ndf, 1)   f32  per-(batch, tile) partial per-channel sum of h1
    h1 = jnp.dot(w1_ref[...], x_ref[...],
                 preferred_element_type=jnp.float32) + b1_ref[...]
    h1 = jnp.where(h1 >= 0, h1, 0.2 * h1)                       # LeakyReLU(0.2)
    if padded:
        # Zero the zero-padded pixel columns so they don't bias the BN stats
        # (h1 there would be leaky(b1), not 0).
        pix = (pl.program_id(1) * tile_p
               + jax.lax.broadcasted_iota(jnp.int32, (1, tile_p), 1))
        h1 = jnp.where(pix < hw, h1, 0.0)
    s_ref[...] = jnp.sum(h1, axis=1, keepdims=True)             # lane reduce (XLU)
    h1b = h1.astype(jnp.bfloat16)
    # Gram matrix h1 @ h1^T: contraction over the large pixel axis (MXU-friendly).
    g_ref[...] = jax.lax.dot_general(
        h1b, h1b, (((1,), (1,)), ((), ())),
        preferred_element_type=jnp.float32)


# ----------------- Pass 2: recompute + folded BN + LeakyReLU + conv3 ---------
def _out_kernel(x_ref, w1_ref, b1_ref, w2f_ref, shift_ref, w3_ref, out_ref):
    # w2f_ref  : (2*ndf, ndf) bf16 with BN inv_std folded in
    # shift_ref: (2*ndf, 1) f32  (= -mean * inv_std)
    # w3_ref   : (2*ndf, 1) f32       out_ref: (1, TP) f32 (lane-dense)
    h1 = jnp.dot(w1_ref[...], x_ref[...],
                 preferred_element_type=jnp.float32) + b1_ref[...]
    h1 = jnp.where(h1 >= 0, h1, 0.2 * h1)                       # LeakyReLU(0.2)
    y = jnp.dot(w2f_ref[...], h1.astype(jnp.bfloat16),
                preferred_element_type=jnp.float32) + shift_ref[...]
    y = jnp.where(y >= 0, y, 0.2 * y)                           # LeakyReLU(0.2)
    # conv3 is a (1, 2*ndf) x (2*ndf, TP) matmul -> VPU multiply + sublane
    # reduce keeps this ~1.5% of the FLOPs off the saturated MXU slot.
    out_ref[...] = jnp.sum(w3_ref[...] * y, axis=0, keepdims=True)


# ---------------------------------- Wrapper ----------------------------------
def _round_up(x, m):
    return ((x + m - 1) // m) * m


def _pick_pixel_tile(hw, n_batch, target=4096, min_steps=8):
    """Pixel-tile size: always a multiple of 128, capped at `target` so the
    per-tile working set (~h1/h2/y f32 + bf16 copies) stays well under v7x's
    32 MiB scoped VMEM default, and shrunk (>= 512) when the grid would have
    too few parallel steps to feed both v7x TensorCores / the DMA pipeline."""
    hw_pad_full = _round_up(hw, 128)
    tp = min(max(128, (target // 128) * 128), hw_pad_full)
    while n_batch * (_round_up(hw, tp) // tp) < min_steps and tp > 512:
        tp = max(512, ((tp // 2) // 128) * 128)
    return tp


def pixel_discriminator_forward(x_nchw, params, *, tile_p=4096):
    """x_nchw: (N, C_in, H, W) float32 -> (N, 1, H, W) float32."""
    w1, b1, w2, w3 = params["w1"], params["b1"], params["w2"], params["w3"]
    n, c_in, h, w = x_nchw.shape
    ndf = w1.shape[0]
    ndf2 = w2.shape[0]
    hw = h * w

    tp = _pick_pixel_tile(hw, n, tile_p)
    hw_pad = _round_up(hw, tp)
    n_tiles = hw_pad // tp
    padded = hw_pad != hw
    grid = (n, n_tiles)

    # NCHW kept: channels on sublanes, pixels on lanes (lane-dense output).
    # bf16 halves HBM traffic for the two reads of x and feeds the bf16 MXU.
    x3 = x_nchw.reshape(n, c_in, hw).astype(jnp.bfloat16)
    if padded:
        x3 = jnp.pad(x3, ((0, 0), (0, 0), (0, hw_pad - hw)))

    w1_bf = w1.astype(jnp.bfloat16)
    b1_col = b1.reshape(ndf, 1).astype(jnp.float32)

    x_spec = pl.BlockSpec((None, c_in, tp), lambda i, j: (i, 0, j))
    w1_spec = pl.BlockSpec((ndf, c_in), lambda i, j: (0, 0))
    b1_spec = pl.BlockSpec((ndf, 1), lambda i, j: (0, 0))

    # ---- Pass 1: per-(batch, tile) partial stats of h1 ----------------------
    g_part, s_part = pl.pallas_call(
        functools.partial(_stats_kernel, hw=hw, tile_p=tp, padded=padded),
        out_shape=(
            jax.ShapeDtypeStruct((n, n_tiles, ndf, ndf), jnp.float32),
            jax.ShapeDtypeStruct((n, n_tiles, ndf, 1), jnp.float32),
        ),
        grid_spec=pltpu.PrefetchScalarGridSpec(
            num_scalar_prefetch=0,
            grid=grid,
            in_specs=[x_spec, w1_spec, b1_spec],
            out_specs=(
                pl.BlockSpec((None, None, ndf, ndf), lambda i, j: (i, j, 0, 0)),
                pl.BlockSpec((None, None, ndf, 1), lambda i, j: (i, j, 0, 0)),
            ),
        ),
        compiler_params=pltpu.CompilerParams(
            dimension_semantics=("parallel", "parallel")),
    )(x3, w1_bf, b1_col)

    # ---- Glue: batch stats -> BN folded into w2 (gamma=1, beta=0) -----------
    eps = 1e-5
    count = n * hw                                    # true pixel count (no pad)
    G = jnp.sum(g_part, axis=(0, 1))                  # (ndf, ndf)
    s = jnp.sum(s_part, axis=(0, 1))                  # (ndf, 1)
    sum_h2 = (w2 @ s)[:, 0]                           # (ndf2,)
    mean = sum_h2 / count
    sumsq_h2 = jnp.sum((w2 @ G) * w2, axis=1)         # diag(w2 G w2^T)
    var = jnp.maximum(sumsq_h2 / count - mean * mean, 0.0)   # guard cancellation
    inv_std = jax.lax.rsqrt(var + eps)
    w2_folded = (inv_std[:, None] * w2).astype(jnp.bfloat16)  # BN scale folded
    shift = (-mean * inv_std).reshape(ndf2, 1).astype(jnp.float32)
    w3_col = w3.reshape(ndf2, 1).astype(jnp.float32)

    # ---- Pass 2: recompute h1, BN-folded conv2, LeakyReLU, conv3 ------------
    out3 = pl.pallas_call(
        _out_kernel,
        out_shape=jax.ShapeDtypeStruct((n, 1, hw_pad), jnp.float32),
        grid_spec=pltpu.PrefetchScalarGridSpec(
            num_scalar_prefetch=0,
            grid=grid,
            in_specs=[x_spec, w1_spec, b1_spec,
                      pl.BlockSpec((ndf2, ndf), lambda i, j: (0, 0)),
                      pl.BlockSpec((ndf2, 1), lambda i, j: (0, 0)),
                      pl.BlockSpec((ndf2, 1), lambda i, j: (0, 0))],
            out_specs=pl.BlockSpec((None, 1, tp), lambda i, j: (i, 0, j)),
        ),
        compiler_params=pltpu.CompilerParams(
            dimension_semantics=("parallel", "parallel")),
    )(x3, w1_bf, b1_col, w2_folded, shift, w3_col)

    if padded:
        out3 = out3[:, :, :hw]
    return out3.reshape(n, 1, h, w)                   # free reshape


# ----------------------------- Pure-JAX reference ----------------------------
def _reference(x_nchw, params):
    """Full-f32 reference with the PyTorch module's exact semantics."""
    w1, b1, w2, w3 = params["w1"], params["b1"], params["w2"], params["w3"]
    n, c, h, w = x_nchw.shape
    x = x_nchw.reshape(n, c, h * w)
    h1 = jnp.einsum("oc,ncp->nop", w1, x) + b1[None, :, None]
    h1 = jnp.where(h1 >= 0, h1, 0.2 * h1)
    h2 = jnp.einsum("oc,ncp->nop", w2, h1)
    mean = jnp.mean(h2, axis=(0, 2), keepdims=True)
    var = jnp.mean((h2 - mean) ** 2, axis=(0, 2), keepdims=True)
    y = (h2 - mean) / jnp.sqrt(var + 1e-5)
    y = jnp.where(y >= 0, y, 0.2 * y)
    out = jnp.einsum("oc,ncp->nop", w3, y)
    return out.reshape(n, 1, h, w)


if __name__ == "__main__":
    # Small, module-consistent shapes: batch=2, input_nc=4, spatial=16, ndf=64.
    N, C_IN, H, W = 2, 4, 16, 16
    NDF = 64

    key = jax.random.PRNGKey(0)
    k_x, k_w1, k_b1, k_w2, k_w3 = jax.random.split(key, 5)

    x = jax.random.normal(k_x, (N, C_IN, H, W), dtype=jnp.float32)

    # 1x1 conv weights stored PyTorch-style as (C_out, C_in).
    params = {
        "w1": jax.random.normal(k_w1, (NDF, C_IN), dtype=jnp.float32) * 0.2,
        "b1": jax.random.normal(k_b1, (NDF,), dtype=jnp.float32) * 0.1,
        "w2": jax.random.normal(k_w2, (2 * NDF, NDF), dtype=jnp.float32) * 0.1,
        "w3": jax.random.normal(k_w3, (1, 2 * NDF), dtype=jnp.float32) * 0.1,
    }

    out = pixel_discriminator_forward(x, params)
    out = jax.block_until_ready(out)

    ref = _reference(x, params)
    assert out.shape == (N, 1, H, W)
    # Kernel uses bf16 MXU operands (f32 accumulation); tolerance is set for
    # bf16 operand rounding vs the full-f32 reference.
    np.testing.assert_allclose(np.asarray(out), np.asarray(ref),
                               rtol=5e-2, atol=5e-2)

    print("KERNEL_OK")
</pallas_src>

<mosaic_0001>
module attributes {stable_mosaic.version = 11 : i64} {
  func.func @_stats_kernel(%arg0: i32, %arg1: i32, %arg2: memref<1x4x256xbf16, #tpu.memory_space<vmem>>, %arg3: memref<64x4xbf16, #tpu.memory_space<vmem>>, %arg4: memref<64x1xf32, #tpu.memory_space<vmem>>, %arg5: memref<1x1x64x64xf32, #tpu.memory_space<vmem>>, %arg6: memref<1x1x64x1xf32, #tpu.memory_space<vmem>>) attributes {dimension_semantics = [#tpu.dimension_semantics<parallel>, #tpu.dimension_semantics<parallel>], iteration_bounds = array<i64: 2, 1>, scalar_prefetch = 0 : i64, scratch_operands = 0 : i64, tpu.core_type = #tpu.core_type<tc>, window_params = [{transform_indices = @transform_0, window_bounds = array<i64: 1, 4, 256>}, {pipeline_mode = #tpu.pipeline_mode<synchronous>, transform_indices = @transform_1, window_bounds = array<i64: 64, 4>}, {pipeline_mode = #tpu.pipeline_mode<synchronous>, transform_indices = @transform_2, window_bounds = array<i64: 64, 1>}, {transform_indices = @transform_3, window_bounds = array<i64: 1, 1, 64, 64>}, {transform_indices = @transform_4, window_bounds = array<i64: 1, 1, 64, 1>}]} {
    %c0 = arith.constant 0 : index
    %c0_0 = arith.constant 0 : index
    %0 = vector.load %arg3[%c0, %c0_0] : memref<64x4xbf16, #tpu.memory_space<vmem>>, vector<64x4xbf16>
    %c0_1 = arith.constant 0 : index
    %c0_2 = arith.constant 0 : index
    %c0_3 = arith.constant 0 : index
    %1 = vector.load %arg2[%c0_1, %c0_2, %c0_3] : memref<1x4x256xbf16, #tpu.memory_space<vmem>>, vector<1x4x256xbf16>
    %2 = vector.shape_cast %1 : vector<1x4x256xbf16> to vector<4x256xbf16>
    %cst = arith.constant dense<0.000000e+00> : vector<64x256xf32>
    %3 = tpu.matmul %0, %2, %cst {dimension_numbers = #tpu.dot_dimension_numbers<[1], [0], [0], [1], [0, 0, 1, 1], [], []>} : vector<64x4xbf16>, vector<4x256xbf16>, vector<64x256xf32> -> vector<64x256xf32>
    %c0_4 = arith.constant 0 : index
    %c0_5 = arith.constant 0 : index
    %4 = vector.load %arg4[%c0_4, %c0_5] : memref<64x1xf32, #tpu.memory_space<vmem>>, vector<64x1xf32>
    %5 = vector.broadcast %4 : vector<64x1xf32> to vector<64x256xf32>
    %6 = arith.addf %3, %5 : vector<64x256xf32>
    %cst_6 = arith.constant 0.000000e+00 : f32
    %7 = vector.broadcast %cst_6 : f32 to vector<64x256xf32>
    %8 = arith.cmpf oge, %6, %7 : vector<64x256xf32>
    %cst_7 = arith.constant 2.000000e-01 : f32
    %9 = vector.broadcast %cst_7 : f32 to vector<64x256xf32>
    %10 = arith.mulf %9, %6 : vector<64x256xf32>
    %11 = arith.select %8, %6, %10 : vector<64x256xi1>, vector<64x256xf32>
    %cst_8 = arith.constant dense<0.000000e+00> : vector<64xf32>
    %12 = vector.multi_reduction <add>, %11, %cst_8 [1] : vector<64x256xf32> to vector<64xf32>
    %13 = vector.shape_cast %12 : vector<64xf32> to vector<64x1xf32>
    %c0_9 = arith.constant 0 : index
    %c0_10 = arith.constant 0 : index
    %c0_11 = arith.constant 0 : index
    %c0_12 = arith.constant 0 : index
    %14 = vector.load %arg6[%c0_9, %c0_10, %c0_11, %c0_12] : memref<1x1x64x1xf32, #tpu.memory_space<vmem>>, vector<1x1x64x1xf32>
    %15 = vector.shape_cast %14 : vector<1x1x64x1xf32> to vector<64x1xf32>
    %16 = vector.shape_cast %13 : vector<64x1xf32> to vector<1x1x64x1xf32>
    tpu.vector_store %arg6[%c0_9, %c0_10, %c0_11, %c0_12], %16 {strides = array<i32>} : memref<1x1x64x1xf32, #tpu.memory_space<vmem>>, vector<1x1x64x1xf32>,
    %17 = arith.truncf %11 : vector<64x256xf32> to vector<64x256xbf16>
    %cst_13 = arith.constant dense<0.000000e+00> : vector<64x64xf32>
    %18 = tpu.matmul %17, %17, %cst_13 {dimension_numbers = #tpu.dot_dimension_numbers<[1], [1], [0], [0], [0, 0, 1, 0], [], []>} : vector<64x256xbf16>, vector<64x256xbf16>, vector<64x64xf32> -> vector<64x64xf32>
    %c0_14 = arith.constant 0 : index
    %c0_15 = arith.constant 0 : index
    %c0_16 = arith.constant 0 : index
    %c0_17 = arith.constant 0 : index
    %19 = vector.load %arg5[%c0_14, %c0_15, %c0_16, %c0_17] : memref<1x1x64x64xf32, #tpu.memory_space<vmem>>, vector<1x1x64x64xf32>
    %20 = vector.shape_cast %19 : vector<1x1x64x64xf32> to vector<64x64xf32>
    %21 = vector.shape_cast %18 : vector<64x64xf32> to vector<1x1x64x64xf32>
    tpu.vector_store %arg5[%c0_14, %c0_15, %c0_16, %c0_17], %21 {strides = array<i32>} : memref<1x1x64x64xf32, #tpu.memory_space<vmem>>, vector<1x1x64x64xf32>,
    return
  }
  func.func @transform_0(%arg0: i32, %arg1: i32) -> (i32, i32, i32) {
    %c0_i32 = arith.constant 0 : i32
    %c0_i32_0 = arith.constant 0 : i32
    return %arg0, %c0_i32, %arg1 : i32, i32, i32
  }
  func.func @transform_1(%arg0: i32, %arg1: i32) -> (i32, i32) {
    %c0_i32 = arith.constant 0 : i32
    %c0_i32_0 = arith.constant 0 : i32
    %c0_i32_1 = arith.constant 0 : i32
    return %c0_i32, %c0_i32_0 : i32, i32
  }
  func.func @transform_2(%arg0: i32, %arg1: i32) -> (i32, i32) {
    %c0_i32 = arith.constant 0 : i32
    %c0_i32_0 = arith.constant 0 : i32
    %c0_i32_1 = arith.constant 0 : i32
    return %c0_i32, %c0_i32_0 : i32, i32
  }
  func.func @transform_3(%arg0: i32, %arg1: i32) -> (i32, i32, i32, i32) {
    %c0_i32 = arith.constant 0 : i32
    %c0_i32_0 = arith.constant 0 : i32
    %c0_i32_1 = arith.constant 0 : i32
    return %arg0, %arg1, %c0_i32, %c0_i32_0 : i32, i32, i32, i32
  }
  func.func @transform_4(%arg0: i32, %arg1: i32) -> (i32, i32, i32, i32) {
    %c0_i32 = arith.constant 0 : i32
    %c0_i32_0 = arith.constant 0 : i32
    %c0_i32_1 = arith.constant 0 : i32
    return %arg0, %arg1, %c0_i32, %c0_i32_0 : i32, i32, i32, i32
  }
}

</mosaic_0001>

<llo_original>
// kernel: tpu_custom_call.1
$region0: #{tpu_custom_call.1}
  #allocation0 [shape = 'u32[]', space=smem, size = 0x4, offset = 0x4, fixed_abs, tag = 'smem constant byte address 0x4 - core index']
  #allocation1 [shape = 'u32[144,128]{1,0:T(1,128)}', space=vmem, size = 0x12000, scoped, tag = 'internal scratch']
  %s0 = inlined_call_operand.vmem [shape: bf16[2,4,256], index: 0, kind: input, shape index: {}]
  %s1 = inlined_call_operand.vmem [shape: bf16[64,4], index: 1, kind: input, shape index: {}]
  %s2 = inlined_call_operand.vmem [shape: f32[64,1], index: 2, kind: input, shape index: {}]
  %s3 = inlined_call_operand.hbm [shape: f32[2,1,64,64], index: 3, kind: output, shape index: {0}]
  %s4 = inlined_call_operand.vmem [shape: f32[2,1,64,1], index: 4, kind: output, shape index: {1}]
  %5 = xla_tuple %s3, %s4
  %s6 = sld [smem:[#allocation0]]
  $region53: #{tpu_custom_call.1} parent=0
    _
  %s8 = ssub.s32 1, %s6
  %s9 = scalar_select 0, %s8, %s6
  $region1: #{tpu_custom_call.1} parent=0
    #allocation2 [shape = 'u8[65536]{0}', space=vmem, size = 0x10000, scoped, tag = 'output window, operand 0']
    #allocation3 [shape = 's32[2]{0}', space=sflag, size = 0x8, scoped, tag = 'scoped memory for tpu_custom_call.1']
    %10 = vsyncpa [#allocation3], 0
    %s11 = scalar_lea.sflag [#allocation3], 1
    %12 = vsyncpa %s11, 0
    loop: start=0, step=1, limit=4
    $region2: #{tpu_custom_call.1} parent=1 // loop_pre_header
      _
    $region3: #{tpu_custom_call.1} parent=1 // loop_header
      %s14 = sphi 0, %s18
      %p15 = scmp.ge.s32.totalorder %s14, 4
      %s21 = sphi 0, %s33
      %s22 = sphi 0, %s29
      %s23 = sphi 0, %s21
      %s24 = sphi 0, %s22
      %s25 = sphi 0, %s23
      %s26 = sphi 0, %s24
      %s38 = sphi 0, %s40
      %s41 = sphi 0, %s38
      %s42 = sphi 0, %s41
      %s58 = sphi 0, %s42
      %s62 = sphi 0, %s62
      %s64 = sphi 0, %s62
      %s65 = sphi 0, %s64
      %s79 = sphi 0, %s65
      %s83 = sphi 0, %s83
      %s85 = sphi 0, %s83
      %s86 = sphi 0, %s85
      %s100 = sphi 0, %s86
      %s108 = sphi 0, %s110
      %s111 = sphi 0, %s108
      %s112 = sphi 0, %s111
      %s128 = sphi 0, %s112
      %s136 = sphi 0, %s138
      %s139 = sphi 0, %s136
      %s140 = sphi 0, %s139
      %s156 = sphi 0, %s140
    $region4: #{tpu_custom_call.1} parent=1 // loop_header_branch
      %17 = sbr.rel (%p15) target = $region8
    $region5: #{tpu_custom_call.1} parent=1 // loop_body
      %s19 = ssub.s32 %s14, 1
      %s20 = ssub.s32 %s14, 2
      %s27 = sadd.s32 1, %s22
      %p28 = scmp.ge.s32.totalorder %s27, 1
      %s29 = scalar_select %p28, 0, %s27
      %s30 = sadd.s32 1, %s21
      %s31 = scalar_select %p28, %s30, %s21
      %p32 = scmp.ge.s32.totalorder %s31, 2
      %s33 = scalar_select %p32, 0, %s31
      %s34 = ssub.s32 %s21, %s33
      %s35 = ssub.s32 %s22, %s29
      %s36 = sor.u32 %s34, %s35
      %p37 = scmp.eq.s32.totalorder %s36, 0
      %s39 = sadd.s32 %s38, 1
      %s40 = scalar_select %p37, %s38, %s39
      %p43 = pneg %p37
      %p44 = scmp.eq.s32.totalorder %s14, 1
      %p45 = por %p43, %p44
      %p46 = scmp.ne.s32.totalorder %s38, %s41
      %p47 = scmp.eq.s32.totalorder %s14, 0
      %p48 = por %p46, %p47
      %p49 = scmp.ne.s32.totalorder %s38, %s41
      %p50 = scmp.eq.s32.totalorder %s19, 1
      %p51 = por %p49, %p50
      %p52 = scmp.ne.s32.totalorder %s41, %s42
      %p53 = scmp.eq.s32.totalorder %s19, 0
      %p54 = por %p52, %p53
      %p55 = scmp.ne.s32.totalorder %s41, %s42
      %p56 = scmp.eq.s32.totalorder %s20, 1
      %p57 = por %p55, %p56
      %p59 = scmp.ne.s32.totalorder %s42, %s58
      %p60 = scmp.eq.s32.totalorder %s20, 0
      %p61 = por %p59, %p60
      %s63 = sadd.s32 %s62, 1
      %p66 = scmp.eq.s32.totalorder %s14, 1
      %p67 = scmp.ne.s32.totalorder %s62, %s64
      %p68 = scmp.eq.s32.totalorder %s14, 0
      %p69 = por %p67, %p68
      %p70 = scmp.ne.s32.totalorder %s62, %s64
      %p71 = scmp.eq.s32.totalorder %s19, 1
      %p72 = por %p70, %p71
      %p73 = scmp.ne.s32.totalorder %s64, %s65
      %p74 = scmp.eq.s32.totalorder %s19, 0
      %p75 = por %p73, %p74
      %p76 = scmp.ne.s32.totalorder %s64, %s65
      %p77 = scmp.eq.s32.totalorder %s20, 1
      %p78 = por %p76, %p77
      %p80 = scmp.ne.s32.totalorder %s65, %s79
      %p81 = scmp.eq.s32.totalorder %s20, 0
      %p82 = por %p80, %p81
      %s84 = sadd.s32 %s83, 1
      %p87 = scmp.eq.s32.totalorder %s14, 1
      %p88 = scmp.ne.s32.totalorder %s83, %s85
      %p89 = scmp.eq.s32.totalorder %s14, 0
      %p90 = por %p88, %p89
      %p91 = scmp.ne.s32.totalorder %s83, %s85
      %p92 = scmp.eq.s32.totalorder %s19, 1
      %p93 = por %p91, %p92
      %p94 = scmp.ne.s32.totalorder %s85, %s86
      %p95 = scmp.eq.s32.totalorder %s19, 0
      %p96 = por %p94, %p95
      %p97 = scmp.ne.s32.totalorder %s85, %s86
      %p98 = scmp.eq.s32.totalorder %s20, 1
      %p99 = por %p97, %p98
      %p101 = scmp.ne.s32.totalorder %s86, %s100
      %p102 = scmp.eq.s32.totalorder %s20, 0
      %p103 = por %p101, %p102
      %s104 = ssub.s32 %s21, %s33
      %s105 = ssub.s32 %s22, %s29
      %s106 = sor.u32 %s104, %s105
      %p107 = scmp.eq.s32.totalorder %s106, 0
      %s109 = sadd.s32 %s108, 1
      %s110 = scalar_select %p107, %s108, %s109
      %p113 = pneg %p107
      %p114 = scmp.eq.s32.totalorder %s14, 1
      %p115 = por %p113, %p114
      %p116 = scmp.ne.s32.totalorder %s108, %s111
      %p117 = scmp.eq.s32.totalorder %s14, 0
      %p118 = por %p116, %p117
      %p119 = scmp.ne.s32.totalorder %s108, %s111
      %p120 = scmp.eq.s32.totalorder %s19, 1
      %p121 = por %p119, %p120
      %p122 = scmp.ne.s32.totalorder %s111, %s112
      %p123 = scmp.eq.s32.totalorder %s19, 0
      %p124 = por %p122, %p123
      %p125 = scmp.ne.s32.totalorder %s111, %s112
      %p126 = scmp.eq.s32.totalorder %s20, 1
      %p127 = por %p125, %p126
      %p129 = scmp.ne.s32.totalorder %s112, %s128
      %p130 = scmp.eq.s32.totalorder %s20, 0
      %p131 = por %p129, %p130
      %s132 = ssub.s32 %s21, %s33
      %s133 = ssub.s32 %s22, %s29
      %s134 = sor.u32 %s132, %s133
      %p135 = scmp.eq.s32.totalorder %s134, 0
      %s137 = sadd.s32 %s136, 1
      %s138 = scalar_select %p135, %s136, %s137
      %p141 = pneg %p135
      %p142 = scmp.eq.s32.totalorder %s14, 1
      %p143 = por %p141, %p142
      %p144 = scmp.ne.s32.totalorder %s136, %s139
      %p145 = scmp.eq.s32.totalorder %s14, 0
      %p146 = por %p144, %p145
      %p147 = scmp.ne.s32.totalorder %s136, %s139
      %p148 = scmp.eq.s32.totalorder %s19, 1
      %p149 = por %p147, %p148
      %p150 = scmp.ne.s32.totalorder %s139, %s140
      %p151 = scmp.eq.s32.totalorder %s19, 0
      %p152 = por %p150, %p151
      %p153 = scmp.ne.s32.totalorder %s139, %s140
      %p154 = scmp.eq.s32.totalorder %s20, 1
      %p155 = por %p153, %p154
      %p157 = scmp.ne.s32.totalorder %s140, %s156
      %p158 = scmp.eq.s32.totalorder %s20, 0
      %p159 = por %p157, %p158
      %p160 = scmp.le.s32.totalorder 1, %s14
      %p161 = scmp.lt.s32.totalorder %s14, 3
      %p162 = pnand %p160, %p161
      %p163 = pneg %p162
      // Predicated region
      $region9: #{tpu_custom_call.1} parent=5 // pred_check
        _
      $region10: #{tpu_custom_call.1} parent=5 // pred_check_branch
        %165 = sbr.rel (%p162) target = $region12
      $region11: #{tpu_custom_call.1} parent=5 // pred_region
        %s166 = ssub.s32 %s14, 1
        // Predicated region
        $region13: #{tpu_custom_call.1} parent=11 // pred_check
          %p167 = pneg %p75
        $region14: #{tpu_custom_call.1} parent=11 // pred_check_branch
          %169 = sbr.rel (%p167) target = $region16
        $region15: #{tpu_custom_call.1} parent=11 // pred_region
          _
        $region16: #{tpu_custom_call.1} parent=11 // pred_fallthru
          _
        // Predicated region
        $region17: #{tpu_custom_call.1} parent=11 // pred_check
          %p170 = pneg %p96
        $region18: #{tpu_custom_call.1} parent=11 // pred_check_branch
          %172 = sbr.rel (%p170) target = $region20
        $region19: #{tpu_custom_call.1} parent=11 // pred_region
          _
        $region20: #{tpu_custom_call.1} parent=11 // pred_fallthru
          _
      $region12: #{tpu_custom_call.1} parent=5 // pred_fallthru
        _
      %p173 = scmp.lt.s32.totalorder %s14, 2
      // Predicated region
      $region21: #{tpu_custom_call.1} parent=5 // pred_check
        %p174 = pneg %p173
      $region22: #{tpu_custom_call.1} parent=5 // pred_check_branch
        %176 = sbr.rel (%p174) target = $region24
      $region23: #{tpu_custom_call.1} parent=5 // pred_region
        // Predicated region
        $region25: #{tpu_custom_call.1} parent=23 // pred_check
          %p177 = pneg %p48
        $region26: #{tpu_custom_call.1} parent=23 // pred_check_branch
          %179 = sbr.rel (%p177) target = $region28
        $region27: #{tpu_custom_call.1} parent=23 // pred_region
          %s180 = smul.u32 2, %s22
          %p181 = scmp.lt.s32.totalorder %s21, 1
          %s182 = scalar_select %p181, %s21, 1
          %p183 = scmp.lt.s32.totalorder %s180, 1
          %s184 = scalar_select %p183, %s180, 1
          %s185 = smul.addr %s182, 2
          %s186 = sadd.s32 %s184, %s185
          %s187 = smul.addr %s186, 2
          %s188 = scalar_lea.vmem %s0, %s187
          %s189 = smul.u32 2, %s22
        $region28: #{tpu_custom_call.1} parent=23 // pred_fallthru
          _
      $region24: #{tpu_custom_call.1} parent=5 // pred_fallthru
        _
      %p190 = scmp.le.s32.totalorder 1, %s14
      %p191 = scmp.lt.s32.totalorder %s14, 3
      %p192 = pnand %p190, %p191
      %p193 = pneg %p192
      // Predicated region
      $region29: #{tpu_custom_call.1} parent=5 // pred_check
        _
      $region30: #{tpu_custom_call.1} parent=5 // pred_check_branch
        %195 = sbr.rel (%p192) target = $region32
      $region31: #{tpu_custom_call.1} parent=5 // pred_region
        %s196 = ssub.s32 %s14, 1
        %s197 = smul.u32 2, %s24
        %p198 = scmp.lt.s32.totalorder %s23, 1
        %s199 = scalar_select %p198, %s23, 1
        %p200 = scmp.lt.s32.totalorder %s197, 1
        %s201 = scalar_select %p200, %s197, 1
        %s202 = smul.addr %s199, 2
        %s203 = sadd.s32 %s201, %s202
        %s204 = smul.addr %s203, 2
        %s205 = scalar_lea.vmem %s0, %s204
        %p206 = pneg %p54
        %p207 = pneg %p51
        %p208 = pneg %p75
        %p209 = pneg %p72
        %p210 = pneg %p96
        %p211 = pneg %p93
        %p212 = pneg %p124
        %p213 = pneg %p121
        %s214 = sand.u32 %s111, 1
        %s215 = scalar_lea.sflag [#allocation3], %s214
        %s216 = sand.u32 %s111, 1
        %s217 = smul.addr %s216, 64
        %s218 = scalar_lea.vmem [#allocation2], %s217
        %p219 = pneg %p152
        %p220 = pneg %p149
        %p221 = scmp.lt.s32.totalorder %s23, 1
        %s222 = scalar_select %p221, %s23, 1
        %p223 = scmp.lt.s32.totalorder %s24, 0
        %s224 = scalar_select %p223, %s24, 0
        %s225 = smul.addr %s224, 8
        %s226 = smul.addr %s222, 8
        %s227 = sadd.s32 %s225, %s226
        %s228 = smul.addr %s227, 8
        %s229 = scalar_lea.vmem %s4, %s228
        %s230 = smul.u32 2, %s24
        %p231 = scmp.lt.s32.totalorder %s23, 1
        %s232 = scalar_select %p231, %s23, 1
        %p233 = scmp.lt.s32.totalorder %s230, 1
        %s234 = scalar_select %p233, %s230, 1
        %s235 = smul.addr %s232, 2
        %s236 = sadd.s32 %s234, %s235
        %s237 = smul.addr %s236, 2
        %s238 = scalar_lea.vmem %s0, %s237
        %s239 = smul.u32 2, %s24
        %p240 = scmp.lt.s32.totalorder %s23, 1
        %s241 = scalar_select %p240, %s23, 1
        %p242 = scmp.lt.s32.totalorder %s24, 0
        %s243 = scalar_select %p242, %s24, 0
        %s244 = smul.addr %s243, 8
        %s245 = smul.addr %s241, 8
        %s246 = sadd.s32 %s244, %s245
        %s247 = smul.addr %s246, 8
        %s248 = scalar_lea.vmem %s4, %s247
        %v250 = vld [vmem:[%s1] sm:$0xf]
        %v251 = vld [vmem:[%s1 + $0x4] sm:$0xf]
        %v252 = vld [vmem:[%s1 + $0x8] sm:$0xf]
        %v253 = vld [vmem:[%s1 + $0xc] sm:$0xf]
        %v254 = vld [vmem:[%s1 + $0x10] sm:$0xf]
        %v255 = vld [vmem:[%s1 + $0x14] sm:$0xf]
        %v256 = vld [vmem:[%s1 + $0x18] sm:$0xf]
        %v257 = vld [vmem:[%s1 + $0x1c] sm:$0xf]
        %v258 = vld [vmem:[%s238] sm:$0xf]
        %v259 = vld [vmem:[%s2] sm:$0xff]
        %v260 = vld [vmem:[%s2 + $0x8] sm:$0xff]
        %v261 = vld [vmem:[%s2 + $0x10] sm:$0xff]
        %v262 = vld [vmem:[%s2 + $0x18] sm:$0xff]
        %v263 = vld [vmem:[%s2 + $0x20] sm:$0xff]
        %v264 = vld [vmem:[%s2 + $0x28] sm:$0xff]
        %v265 = vld [vmem:[%s2 + $0x30] sm:$0xff]
        %v266 = vld [vmem:[%s2 + $0x38] sm:$0xff]
        %268 = vset.pattern.permute.xlu0 0
        %269 = vperm.xlu0 %268, %v259
        %v270 = vpop.permute.xlu0 %269
        %273 = vset.pattern.permute.xlu0 0
        %274 = vperm.xlu0 %273, %v260
        %v275 = vpop.permute.xlu0 %274
        %278 = vset.pattern.permute.xlu0 0
        %279 = vperm.xlu0 %278, %v261
        %v280 = vpop.permute.xlu0 %279
        %283 = vset.pattern.permute.xlu0 0
        %284 = vperm.xlu0 %283, %v262
        %v285 = vpop.permute.xlu0 %284
        %288 = vset.pattern.permute.xlu0 0
        %289 = vperm.xlu0 %288, %v263
        %v290 = vpop.permute.xlu0 %289
        %293 = vset.pattern.permute.xlu0 0
        %294 = vperm.xlu0 %293, %v264
        %v295 = vpop.permute.xlu0 %294
        %298 = vset.pattern.permute.xlu0 0
        %299 = vperm.xlu0 %298, %v265
        %v300 = vpop.permute.xlu0 %299
        %303 = vset.pattern.permute.xlu0 0
        %304 = vperm.xlu0 %303, %v266
        %v305 = vpop.permute.xlu0 %304
        %v315 = vunpack.c.l.b16 %v250
        %v316 = vunpack.c.l.b16 %v251
        %v317 = vunpack.c.l.b16 %v252
        %v318 = vunpack.c.l.b16 %v253
        %v319 = vunpack.c.l.b16 %v254
        %v320 = vunpack.c.l.b16 %v255
        %v321 = vunpack.c.l.b16 %v256
        %v322 = vunpack.c.l.b16 %v257
        %v323 = vpack.c.b16 %v316, %v315
        %v324 = vpack.c.b16 %v318, %v317
        %v325 = vpack.c.b16 %v320, %v319
        %v326 = vpack.c.b16 %v322, %v321
        %v329 = vunpack.c.l.s4 1983009808
        %v330 = vunpack.c.0.s8 %v329
        %v331 = vlaneseq
        %v332 = vshrl.u32 %v331, 7
        %v333 = vsub.s32 %v330, %v332
        %v334 = vrot.slane %v258, %v333
        %v335 = vcombine.high %v334, %v334
        %vm336 = vcmask 31744
        %v338 = vsel %vm336, %v323, 0
        %v341 = vsel %vm336, %v324, 0
        %v344 = vsel %vm336, %v325, 0
        %v347 = vsel %vm336, %v326, 0
        %vm349 = vcmask 1041408
        %v351 = vsel %vm349, %v334, 0
        %v354 = vsel %vm349, %v335, 0
        %356 = vmatprep.subr.bf16.mxu0 0
        %357 = vmatpush1.bf16.msra.mxu0 0
        %358 = vmatprep.subr.bf16.mxu0 0
        %359 = vmatpush1.bf16.msra.mxu0 0
        %360 = vmatprep.subr.bf16.mxu0 0
        %361 = vmatpush1.bf16.msra.mxu0 0
        %362 = vmatprep.subr.bf16.mxu0 0
        %363 = vmatpush1.bf16.msra.mxu0 0
        %364 = vmatprep.subr.bf16.mxu0 0
        %365 = vmatpush1.bf16.msra.mxu0 0
        %366 = vmatprep.subr.bf16.mxu0 0
        %367 = vmatpush1.bf16.msra.mxu0 0
        %368 = vmatprep.subr.bf16.mxu0 0
        %369 = vmatpush1.bf16.msra.mxu0 0
        %370 = vmatprep.subr.bf16.mxu0 %v354
        %371 = vmatpush1.bf16.msra.mxu0 %v351
        %372 = vmatprep.subr.bf16.mxu0 0
        %373 = vmatpush2.bf16.msra.mxu0 0
        %374 = vmatprep.subr.bf16.mxu0 0
        %375 = vmatpush2.bf16.msra.mxu0 0
        %376 = vmatprep.subr.bf16.mxu0 0
        %377 = vmatpush2.bf16.msra.mxu0 0
        %378 = vmatprep.subr.bf16.mxu0 0
        %379 = vmatpush2.bf16.msra.mxu0 0
        %380 = vmatprep.subr.bf16.mxu0 0
        %381 = vmatpush2.bf16.msra.mxu0 0
        %382 = vmatprep.subr.bf16.mxu0 0
        %383 = vmatpush2.bf16.msra.mxu0 0
        %384 = vmatprep.subr.bf16.mxu0 0
        %385 = vmatpush2.bf16.msra.mxu0 0
        %386 = vmatprep.subr.bf16.mxu0 0
        %387 = vmatpush2.bf16.msra.mxu0 0
        %388 = vmatprep.mubr.bf16.mxu0 0
        %389 = vmatmul.mubr.bf16.gmra.mxu0 %v338
        %v390 = vpop.f32.mrf.mxu0
        %v391 = vadd.f32 %v270, %v390
        %v392 = vpop.f32.mrf.mxu0
        %v393 = vadd.f32 %v270, %v392
        %v394 = vpop.f32.mrf.mxu0
        %v395 = vadd.f32 %v275, %v394
        %v396 = vpop.f32.mrf.mxu0
        %v397 = vadd.f32 %v275, %v396
        %398 = vmatprep.mubr.bf16.mxu0 0
        %399 = vmatmul.mubr.bf16.gmra.mxu0 %v341
        %v400 = vpop.f32.mrf.mxu0
        %v401 = vadd.f32 %v280, %v400
        %v402 = vpop.f32.mrf.mxu0
        %v403 = vadd.f32 %v280, %v402
        %v404 = vpop.f32.mrf.mxu0
        %v405 = vadd.f32 %v285, %v404
        %v406 = vpop.f32.mrf.mxu0
        %v407 = vadd.f32 %v285, %v406
        %408 = vmatprep.mubr.bf16.mxu0 0
        %409 = vmatmul.mubr.bf16.gmra.mxu0 %v344
        %v410 = vpop.f32.mrf.mxu0
        %v411 = vadd.f32 %v290, %v410
        %v412 = vpop.f32.mrf.mxu0
        %v413 = vadd.f32 %v290, %v412
        %v414 = vpop.f32.mrf.mxu0
        %v415 = vadd.f32 %v295, %v414
        %v416 = vpop.f32.mrf.mxu0
        %v417 = vadd.f32 %v295, %v416
        %418 = vmatprep.mubr.bf16.mxu0 0
        %419 = vmatmul.mubr.bf16.gmra.mxu0 %v347
        %v420 = vpop.f32.mrf.mxu0
        %v421 = vadd.f32 %v300, %v420
        %v422 = vpop.f32.mrf.mxu0
        %v423 = vadd.f32 %v300, %v422
        %v424 = vpop.f32.mrf.mxu0
        %v425 = vadd.f32 %v305, %v424
        %v426 = vpop.f32.mrf.mxu0
        %v427 = vadd.f32 %v305, %v426
        %428 = vdwg.mxu0
        %vm429 = vcmp.ge.f32.partialorder %v391, 0.0
        %vm430 = vcmp.ge.f32.partialorder %v393, 0.0
        %vm431 = vcmp.ge.f32.partialorder %v395, 0.0
        %vm432 = vcmp.ge.f32.partialorder %v397, 0.0
        %vm433 = vcmp.ge.f32.partialorder %v401, 0.0
        %vm434 = vcmp.ge.f32.partialorder %v403, 0.0
        %vm435 = vcmp.ge.f32.partialorder %v405, 0.0
        %vm436 = vcmp.ge.f32.partialorder %v407, 0.0
        %vm437 = vcmp.ge.f32.partialorder %v411, 0.0
        %vm438 = vcmp.ge.f32.partialorder %v413, 0.0
        %vm439 = vcmp.ge.f32.partialorder %v415, 0.0
        %vm440 = vcmp.ge.f32.partialorder %v417, 0.0
        %vm441 = vcmp.ge.f32.partialorder %v421, 0.0
        %vm442 = vcmp.ge.f32.partialorder %v423, 0.0
        %vm443 = vcmp.ge.f32.partialorder %v425, 0.0
        %vm444 = vcmp.ge.f32.partialorder %v427, 0.0
        %v445 = vmul.f32 %v391, 0.2
        %v446 = vmul.f32 %v393, 0.2
        %v447 = vmul.f32 %v395, 0.2
        %v448 = vmul.f32 %v397, 0.2
        %v449 = vmul.f32 %v401, 0.2
        %v450 = vmul.f32 %v403, 0.2
        %v451 = vmul.f32 %v405, 0.2
        %v452 = vmul.f32 %v407, 0.2
        %v453 = vmul.f32 %v411, 0.2
        %v454 = vmul.f32 %v413, 0.2
        %v455 = vmul.f32 %v415, 0.2
        %v456 = vmul.f32 %v417, 0.2
        %v457 = vmul.f32 %v421, 0.2
        %v458 = vmul.f32 %v423, 0.2
        %v459 = vmul.f32 %v425, 0.2
        %v460 = vmul.f32 %v427, 0.2
        %v461 = vsel %vm429, %v391, %v445
        %v462 = vsel %vm430, %v393, %v446
        %v463 = vsel %vm431, %v395, %v447
        %v464 = vsel %vm432, %v397, %v448
        %v465 = vsel %vm433, %v401, %v449
        %v466 = vsel %vm434, %v403, %v450
        %v467 = vsel %vm435, %v405, %v451
        %v468 = vsel %vm436, %v407, %v452
        %v469 = vsel %vm437, %v411, %v453
        %v470 = vsel %vm438, %v413, %v454
        %v471 = vsel %vm439, %v415, %v455
        %v472 = vsel %vm440, %v417, %v456
        %v473 = vsel %vm441, %v421, %v457
        %v474 = vsel %vm442, %v423, %v458
        %v475 = vsel %vm443, %v425, %v459
        %v476 = vsel %vm444, %v427, %v460
        %v477 = vadd.f32 %v461, %v462
        %478 = vadd.xlane.f32.xlu0 %v477
        %v479 = vpop.xlane.xlu0 %478
        %v480 = vadd.f32 %v463, %v464
        %481 = vadd.xlane.f32.xlu0 %v480
        %v482 = vpop.xlane.xlu0 %481
        %v483 = vadd.f32 %v465, %v466
        %484 = vadd.xlane.f32.xlu0 %v483
        %v485 = vpop.xlane.xlu0 %484
        %v486 = vadd.f32 %v467, %v468
        %487 = vadd.xlane.f32.xlu0 %v486
        %v488 = vpop.xlane.xlu0 %487
        %v489 = vadd.f32 %v469, %v470
        %490 = vadd.xlane.f32.xlu0 %v489
        %v491 = vpop.xlane.xlu0 %490
        %v492 = vadd.f32 %v471, %v472
        %493 = vadd.xlane.f32.xlu0 %v492
        %v494 = vpop.xlane.xlu0 %493
        %v495 = vadd.f32 %v473, %v474
        %496 = vadd.xlane.f32.xlu0 %v495
        %v497 = vpop.xlane.xlu0 %496
        %v498 = vadd.f32 %v475, %v476
        %499 = vadd.xlane.f32.xlu0 %v498
        %v500 = vpop.xlane.xlu0 %499
        %vm501 = vcmask 7168
        %502 = vst.msk [vmem:[%s248] sm:$0xff] %vm501, %v479
        %503 = vst.msk [vmem:[%s248 + $0x8] sm:$0xff] %vm501, %v482
        %504 = vst.msk [vmem:[%s248 + $0x10] sm:$0xff] %vm501, %v485
        %505 = vst.msk [vmem:[%s248 + $0x18] sm:$0xff] %vm501, %v488
        %506 = vst.msk [vmem:[%s248 + $0x20] sm:$0xff] %vm501, %v491
        %507 = vst.msk [vmem:[%s248 + $0x28] sm:$0xff] %vm501, %v494
        %508 = vst.msk [vmem:[%s248 + $0x30] sm:$0xff] %vm501, %v497
        %509 = vst.msk [vmem:[%s248 + $0x38] sm:$0xff] %vm501, %v500
        %v510 = vpack.c.bf16 %v463, %v461
        %v511 = vpack.c.bf16 %v464, %v462
        %v512 = vpack.c.bf16 %v467, %v465
        %v513 = vpack.c.bf16 %v468, %v466
        %v514 = vpack.c.bf16 %v471, %v469
        %v515 = vpack.c.bf16 %v472, %v470
        %v516 = vpack.c.bf16 %v475, %v473
        %v517 = vpack.c.bf16 %v476, %v474
        %518 = vmatprep.subr.bf16.mxu0 0
        %519 = vmatpush1.bf16.xpose.msra.mxu0 0
        %520 = vmatprep.subr.bf16.mxu0 0
        %521 = vmatpush1.bf16.xpose.msra.mxu0 0
        %522 = vmatprep.subr.bf16.mxu0 0
        %523 = vmatpush1.bf16.xpose.msra.mxu0 0
        %524 = vmatprep.subr.bf16.mxu0 0
        %525 = vmatpush1.bf16.xpose.msra.mxu0 0
        %526 = vmatprep.subr.bf16.mxu0 %v517
        %527 = vmatpush1.bf16.xpose.msra.mxu0 %v516
        %528 = vmatprep.subr.bf16.mxu0 %v515
        %529 = vmatpush1.bf16.xpose.msra.mxu0 %v514
        %530 = vmatprep.subr.bf16.mxu0 %v513
        %531 = vmatpush1.bf16.xpose.msra.mxu0 %v512
        %532 = vmatprep.subr.bf16.mxu0 %v511
        %533 = vmatpush1.bf16.xpose.msra.mxu0 %v510
        %534 = vmatprep.subr.bf16.mxu0 0
        %535 = vmatpush2.bf16.xpose.msra.mxu0 0
        %536 = vmatprep.subr.bf16.mxu0 0
        %537 = vmatpush2.bf16.xpose.msra.mxu0 0
        %538 = vmatprep.subr.bf16.mxu0 0
        %539 = vmatpush2.bf16.xpose.msra.mxu0 0
        %540 = vmatprep.subr.bf16.mxu0 0
        %541 = vmatpush2.bf16.xpose.msra.mxu0 0
        %542 = vmatprep.subr.bf16.mxu0 0
        %543 = vmatpush2.bf16.xpose.msra.mxu0 0
        %544 = vmatprep.subr.bf16.mxu0 0
        %545 = vmatpush2.bf16.xpose.msra.mxu0 0
        %546 = vmatprep.subr.bf16.mxu0 0
        %547 = vmatpush2.bf16.xpose.msra.mxu0 0
        %548 = vmatprep.subr.bf16.mxu0 0
        %549 = vmatpush2.bf16.xpose.msra.mxu0 0
        %550 = vmatprep.mubr.bf16.mxu0 %v511
        %551 = vmatmul.mubr.bf16.gmra.mxu0 %v510
        %v552 = vpop.f32.mrf.mxu0
        %v553 = vadd.f32 0.0, %v552
        %v554 = vpop.f32.mrf.mxu0
        %v555 = vpop.f32.mrf.mxu0
        %v556 = vadd.f32 0.0, %v555
        %v557 = vpop.f32.mrf.mxu0
        %558 = vmatprep.mubr.bf16.mxu0 %v513
        %559 = vmatmul.mubr.bf16.gmra.mxu0 %v512
        %v560 = vpop.f32.mrf.mxu0
        %v561 = vadd.f32 0.0, %v560
        %v562 = vpop.f32.mrf.mxu0
        %v563 = vpop.f32.mrf.mxu0
        %v564 = vadd.f32 0.0, %v563
        %v565 = vpop.f32.mrf.mxu0
        %566 = vmatprep.mubr.bf16.mxu0 %v515
        %567 = vmatmul.mubr.bf16.gmra.mxu0 %v514
        %v568 = vpop.f32.mrf.mxu0
        %v569 = vadd.f32 0.0, %v568
        %v570 = vpop.f32.mrf.mxu0
        %v571 = vpop.f32.mrf.mxu0
        %v572 = vadd.f32 0.0, %v571
        %v573 = vpop.f32.mrf.mxu0
        %574 = vmatprep.mubr.bf16.mxu0 %v517
        %575 = vmatmul.mubr.bf16.gmra.mxu0 %v516
        %v576 = vpop.f32.mrf.mxu0
        %v577 = vadd.f32 0.0, %v576
        %v578 = vpop.f32.mrf.mxu0
        %v579 = vpop.f32.mrf.mxu0
        %v580 = vadd.f32 0.0, %v579
        %v581 = vpop.f32.mrf.mxu0
        %582 = vdwg.mxu0
        %vm583 = vcmask 523264
        %584 = vst.msk [vmem:[%s218] sm:$0xff] %vm583, %v553
        %585 = vst.msk [vmem:[%s218 + $0x8] sm:$0xff] %vm583, %v556
        %586 = vst.msk [vmem:[%s218 + $0x10] sm:$0xff] %vm583, %v561
        %587 = vst.msk [vmem:[%s218 + $0x18] sm:$0xff] %vm583, %v564
        %588 = vst.msk [vmem:[%s218 + $0x20] sm:$0xff] %vm583, %v569
        %589 = vst.msk [vmem:[%s218 + $0x28] sm:$0xff] %vm583, %v572
        %590 = vst.msk [vmem:[%s218 + $0x30] sm:$0xff] %vm583, %v577
        %591 = vst.msk [vmem:[%s218 + $0x38] sm:$0xff] %vm583, %v580
        %s592 = sand.u32 %s111, 1
        %s593 = scalar_lea.sflag [#allocation3], %s592
        %s594 = sand.u32 %s111, 1
        %s595 = smul.addr %s594, 64
        %s596 = scalar_lea.vmem [#allocation2], %s595
        %p597 = scmp.lt.s32.totalorder %s23, 1
        %s598 = scalar_select %p597, %s23, 1
        %p599 = scmp.lt.s32.totalorder %s24, 0
        %s600 = scalar_select %p599, %s24, 0
        %s601 = smul.addr %s600, 8
        %s602 = smul.addr %s598, 8
        %s603 = sadd.s32 %s601, %s602
        %s604 = smul.addr %s603, 8
        %s605 = scalar_lea.vmem %s4, %s604
        // Predicated region
        $region33: #{tpu_custom_call.1} parent=31 // pred_check
          %p606 = pneg %p121
        $region34: #{tpu_custom_call.1} parent=31 // pred_check_branch
          %608 = sbr.rel (%p606) target = $region36
        $region35: #{tpu_custom_call.1} parent=31 // pred_region
          %s610 = ssub.s32 1024, 1024
          %611 = vsyncadd %s593, %s610
          %s612 = smul.addr %s24, 8
          %s613 = smul.addr %s23, 8
          %s614 = sadd.s32 %s612, %s613
          %s615 = smul.addr %s614, 128
          %s616 = scalar_lea.hbm %s3, %s615
          %s617 = sshll.u32 %s596, 4
          %s618 = int_to_ptr.vmem [resolvable:$true] %s617
          %623 = dma.vmem_to_hbm [thread:$0]  %s618, 1024, %s616, %s593, 128, 128, 8
        $region36: #{tpu_custom_call.1} parent=31 // pred_fallthru
          _
        // Predicated region
        $region37: #{tpu_custom_call.1} parent=31 // pred_check
          %p624 = pneg %p149
        $region38: #{tpu_custom_call.1} parent=31 // pred_check_branch
          %626 = sbr.rel (%p624) target = $region40
        $region39: #{tpu_custom_call.1} parent=31 // pred_region
          _
        $region40: #{tpu_custom_call.1} parent=31 // pred_fallthru
          _
      $region32: #{tpu_custom_call.1} parent=5 // pred_fallthru
        _
      %p627 = scmp.le.s32.totalorder 2, %s14
      // Predicated region
      $region41: #{tpu_custom_call.1} parent=5 // pred_check
        %p628 = pneg %p627
      $region42: #{tpu_custom_call.1} parent=5 // pred_check_branch
        %630 = sbr.rel (%p628) target = $region44
      $region43: #{tpu_custom_call.1} parent=5 // pred_region
        %s631 = ssub.s32 %s14, 2
        // Predicated region
        $region45: #{tpu_custom_call.1} parent=43 // pred_check
          %p632 = pneg %p127
        $region46: #{tpu_custom_call.1} parent=43 // pred_check_branch
          %634 = sbr.rel (%p632) target = $region48
        $region47: #{tpu_custom_call.1} parent=43 // pred_region
          %s635 = sand.u32 %s112, 1
          %s636 = scalar_lea.sflag [#allocation3], %s635
          %s637 = sand.u32 %s112, 1
          %s638 = smul.addr %s637, 64
          %s639 = scalar_lea.vmem [#allocation2], %s638
          %640 = dma.done %s636, 1024
        $region48: #{tpu_custom_call.1} parent=43 // pred_fallthru
          _
        // Predicated region
        $region49: #{tpu_custom_call.1} parent=43 // pred_check
          %p641 = pneg %p155
        $region50: #{tpu_custom_call.1} parent=43 // pred_check_branch
          %643 = sbr.rel (%p641) target = $region52
        $region51: #{tpu_custom_call.1} parent=43 // pred_region
          %p644 = scmp.lt.s32.totalorder %s25, 1
          %s645 = scalar_select %p644, %s25, 1
          %p646 = scmp.lt.s32.totalorder %s26, 0
          %s647 = scalar_select %p646, %s26, 0
          %s648 = smul.addr %s647, 8
          %s649 = smul.addr %s645, 8
          %s650 = sadd.s32 %s648, %s649
          %s651 = smul.addr %s650, 8
          %s652 = scalar_lea.vmem %s4, %s651
        $region52: #{tpu_custom_call.1} parent=43 // pred_fallthru
          _
      $region44: #{tpu_custom_call.1} parent=5 // pred_fallthru
        _
    $region6: #{tpu_custom_call.1} parent=1 // loop_footer
      %s18 = sadd.s32 1, %s14
    $region7: #{tpu_custom_call.1} parent=1 // loop_footer_branch
      %13 = sbr.rel target = $region3
    $region8: #{tpu_custom_call.1} parent=1 // loop_exit
      _
    %653 = vsyncpa [#allocation3], 1
    %s654 = scalar_lea.sflag [#allocation3], 1
    %655 = vsyncpa %s654, 1

</llo_original>
